<compile_context>
chip_gen: v5e
topology: v5e:2x2
jax: 0.10.0
libtpu: 0.0.40
codegen_flags: <defaults>
</compile_context>

<pallas_src>
import functools

import jax
import jax.numpy as jnp
from jax import lax
from jax.experimental import pallas as pl
from jax.experimental.pallas import tpu as pltpu


def _cdiv(a, b):
    return -(-a // b)


def _round_up(a, b):
    return _cdiv(a, b) * b


def _moving_avg_kernel(fh_ref, cur_ref, bh_ref, o_ref, buf_ref, *,
                       k, stride, pad, L, TB, HB, FRONT, OFF, SPAN, NB,
                       CH, N_CHUNKS):
    """One (lane-tile, time-tile) grid step.

    buf_ref is assembled so that for every row q that a *valid* output of this
    tile reads:  buf_ref[OFF + q] == x[clip(t*TB - pad + q, 0, L-1)].
    Rows only read by out-of-range (dropped) output rows may hold garbage.
    """
    t = pl.program_id(1)
    DL = o_ref.shape[-1]

    # ---- assemble the replicate-padded window in VMEM (aligned stores) ----
    buf_ref[FRONT:FRONT + TB, :] = cur_ref[...]

    if pad > 0:
        # rows [0, FRONT): left halo.  For t == 0 these are replicate copies of
        # x[0]; otherwise the tail of the previous HB-row block.
        first = jnp.broadcast_to(cur_ref[0:1, :], (FRONT, DL))
        prev_tail = fh_ref[HB - FRONT:HB, :]
        buf_ref[0:FRONT, :] = jnp.where(t == 0, first, prev_tail)

    if NB > 0:
        # rows [FRONT+TB, FRONT+TB+NB): right halo from the next HB-row block.
        buf_ref[FRONT + TB:FRONT + TB + NB, :] = bh_ref[0:NB, :]

    if pad > 0:
        # Replicate x[L-1] over the (at most `pad`) tail rows that valid outputs
        # still read; only fires on the last time tile(s).
        q_l = L + pad - t * TB          # first q whose source row index is >= L
        @pl.when(q_l < SPAN)
        def _():
            last = buf_ref[pl.ds(OFF + q_l - 1, 1), :]      # genuine x[L-1]
            buf_ref[pl.ds(OFF + q_l, pad), :] = jnp.broadcast_to(last, (pad, DL))

    # ---- windowed mean, CH output rows at a time (bounded vreg pressure) ----
    def chunk_body(c, carry):
        r0 = pl.multiple_of(c * CH, CH)
        acc = jnp.zeros((CH, DL), jnp.float32)
        for j in range(k):
            if stride == 1:
                sl = buf_ref[pl.ds(OFF + r0 + j, CH), :]
            else:
                sl = buf_ref[pl.ds(OFF + r0 * stride + j, CH, stride=stride), :]
            acc = acc + sl.astype(jnp.float32)
        o_ref[pl.ds(r0, CH), :] = (acc * (1.0 / k)).astype(o_ref.dtype)
        return carry

    lax.fori_loop(0, N_CHUNKS, chunk_body, 0)


def moving_avg(x, kernel_size, stride, *, max_time_rows=1024):
    """Equivalent of the PyTorch moving_avg.forward for x of shape (B, L, C)."""
    B, L, C = x.shape
    k = int(kernel_size)
    s = int(stride)
    pad = (k - 1) // 2
    out_len = (L + 2 * pad - k) // s + 1
    if out_len <= 0:
        return jnp.zeros((B, 0, C), x.dtype)

    # ---- lane-dense layout: fold batch onto the lane (last) axis ----
    D = B * C
    x2d = jnp.transpose(x, (1, 0, 2)).reshape(L, D)

    # ---- tile-size selection ----
    itemsize = jnp.dtype(x.dtype).itemsize
    if D % 128 == 0:
        DL = min(D, 512)
    elif D <= 512:
        DL = D                      # full width (allowed when block == array dim)
    else:
        DL = 512                    # multiple of 128; ragged lane edge is masked

    HB = _round_up(max(k, 1), 8)    # halo block rows (>= k, multiple of 8)
    # ~1.5 MiB per input block so input+output double-buffering fits comfortably
    # under v5e's 16 MiB / v7x's 32 MiB default scoped VMEM.
    budget_rows = max(HB, int((1.5 * 2 ** 20) // max(1, DL * itemsize * s)))
    budget_rows = min(budget_rows, int(max_time_rows))
    tgt = max(HB, (budget_rows // HB) * HB)
    T_OUT = min(_round_up(out_len, HB), tgt)    # output rows per grid step
    TB = T_OUT * s                              # input rows per grid step
    RF = TB // HB

    FRONT = _round_up(pad, 8) if pad > 0 else 0
    OFF = FRONT - pad
    SPAN = (T_OUT - 1) * s + k                  # buffer rows a tile can read
    n_back = k - s - pad
    NB = _round_up(n_back, 8) if n_back > 0 else 0
    BUF_ROWS = FRONT + TB + HB

    # accumulator chunk: ~16 f32 vregs
    ch_cap = max(8, (16384 // max(1, DL)) // 8 * 8)
    CH = min(T_OUT, ch_cap)
    while T_OUT % CH:
        CH -= 8
    N_CHUNKS = T_OUT // CH

    GD = _cdiv(D, DL)
    GT = _cdiv(out_len, T_OUT)
    GH = _cdiv(L, HB)
    GCT = _cdiv(L, TB)

    kernel = functools.partial(
        _moving_avg_kernel,
        k=k, stride=s, pad=pad, L=L, TB=TB, HB=HB,
        FRONT=FRONT, OFF=OFF, SPAN=SPAN, NB=NB, CH=CH, N_CHUNKS=N_CHUNKS)

    fh_spec = pl.BlockSpec((HB, DL), lambda d, t: (jnp.maximum(t * RF - 1, 0), d))
    cur_spec = pl.BlockSpec((TB, DL), lambda d, t: (jnp.minimum(t, GCT - 1), d))
    bh_spec = pl.BlockSpec((HB, DL),
                           lambda d, t: (jnp.minimum((t + 1) * RF, GH - 1), d))
    out_spec = pl.BlockSpec((T_OUT, DL), lambda d, t: (t, d))

    out2d = pl.pallas_call(
        kernel,
        out_shape=jax.ShapeDtypeStruct((out_len, D), x.dtype),
        grid_spec=pltpu.PrefetchScalarGridSpec(
            num_scalar_prefetch=0,
            grid=(GD, GT),
            in_specs=[fh_spec, cur_spec, bh_spec],
            out_specs=out_spec,
            scratch_shapes=[pltpu.VMEM((BUF_ROWS, DL), x.dtype)]),
        compiler_params=pltpu.CompilerParams(
            dimension_semantics=("parallel", "parallel"),
            vmem_limit_bytes=32 * 1024 * 1024),
    )(x2d, x2d, x2d)

    return jnp.transpose(out2d.reshape(out_len, B, C), (1, 0, 2))


def _reference_moving_avg(x, kernel_size, stride):
    """Pure-JAX reference matching the torch module (for correctness check)."""
    pad = (kernel_size - 1) // 2
    front = jnp.repeat(x[:, 0:1, :], pad, axis=1)
    end = jnp.repeat(x[:, -1:, :], pad, axis=1)
    xp = jnp.concatenate([front, x, end], axis=1)
    L_pad = xp.shape[1]
    out_len = (L_pad - kernel_size) // stride + 1
    outs = [jnp.mean(xp[:, t * stride:t * stride + kernel_size, :], axis=1)
            for t in range(out_len)]
    return jnp.stack(outs, axis=1)


if __name__ == "__main__":
    key = jax.random.PRNGKey(0)
    B, L, C = 2, 16, 8          # (batch, seq_len, channels)
    x = jax.random.normal(key, (B, L, C), dtype=jnp.float32)

    checks = [
        dict(kernel_size=5, stride=1, max_time_rows=1024),  # default single tile
        dict(kernel_size=5, stride=1, max_time_rows=8),     # multi time-tile (halo path)
        dict(kernel_size=6, stride=1, max_time_rows=8),     # even kernel (shrinking output)
        dict(kernel_size=25, stride=1, max_time_rows=1024), # large window, k > L
    ]
    for cfg in checks:
        out = moving_avg(x, cfg["kernel_size"], cfg["stride"],
                         max_time_rows=cfg["max_time_rows"])
        out = jax.block_until_ready(out)
        ref = _reference_moving_avg(x, cfg["kernel_size"], cfg["stride"])
        assert out.shape == ref.shape, (cfg, out.shape, ref.shape)
        assert jnp.allclose(out, ref, atol=1e-5, rtol=1e-5), cfg

    print("KERNEL_OK")
</pallas_src>

<mosaic_0001>
module attributes {stable_mosaic.version = 11 : i64} {
  func.func @_moving_avg_kernel(%arg0: i32, %arg1: i32, %arg2: memref<8x16xf32, #tpu.memory_space<vmem>>, %arg3: memref<16x16xf32, #tpu.memory_space<vmem>>, %arg4: memref<8x16xf32, #tpu.memory_space<vmem>>, %arg5: memref<16x16xf32, #tpu.memory_space<vmem>>, %arg6: memref<32x16xf32, #tpu.memory_space<vmem>>) attributes {dimension_semantics = [#tpu.dimension_semantics<parallel>, #tpu.dimension_semantics<parallel>], iteration_bounds = array<i64: 1, 1>, scalar_prefetch = 0 : i64, scratch_operands = 1 : i64, tpu.core_type = #tpu.core_type<tc>, window_params = [{transform_indices = @transform_0, window_bounds = array<i64: 8, 16>}, {transform_indices = @transform_1, window_bounds = array<i64: 16, 16>}, {transform_indices = @transform_2, window_bounds = array<i64: 8, 16>}, {transform_indices = @transform_3, window_bounds = array<i64: 16, 16>}]} {
    %c0 = arith.constant 0 : index
    %c0_0 = arith.constant 0 : index
    %0 = vector.load %arg3[%c0, %c0_0] : memref<16x16xf32, #tpu.memory_space<vmem>>, vector<16x16xf32>
    %c8 = arith.constant 8 : index
    %c0_1 = arith.constant 0 : index
    %1 = vector.load %arg6[%c8, %c0_1] : memref<32x16xf32, #tpu.memory_space<vmem>>, vector<16x16xf32>
    tpu.vector_store %arg6[%c8, %c0_1], %0 {strides = array<i32>} : memref<32x16xf32, #tpu.memory_space<vmem>>, vector<16x16xf32>,
    %c0_2 = arith.constant 0 : index
    %c0_3 = arith.constant 0 : index
    %2 = vector.load %arg3[%c0_2, %c0_3] : memref<16x16xf32, #tpu.memory_space<vmem>>, vector<1x16xf32>
    %3 = vector.shape_cast %2 : vector<1x16xf32> to vector<1x16xf32>
    %4 = vector.broadcast %3 : vector<1x16xf32> to vector<8x16xf32>
    %c0_4 = arith.constant 0 : index
    %c0_5 = arith.constant 0 : index
    %5 = vector.load %arg2[%c0_4, %c0_5] : memref<8x16xf32, #tpu.memory_space<vmem>>, vector<8x16xf32>
    %c0_i32 = arith.constant 0 : i32
    %6 = arith.cmpi eq, %arg1, %c0_i32 : i32
    %7 = arith.select %6, %4, %5 : vector<8x16xf32>
    %c0_6 = arith.constant 0 : index
    %c0_7 = arith.constant 0 : index
    %8 = vector.load %arg6[%c0_6, %c0_7] : memref<32x16xf32, #tpu.memory_space<vmem>>, vector<8x16xf32>
    tpu.vector_store %arg6[%c0_6, %c0_7], %7 {strides = array<i32>} : memref<32x16xf32, #tpu.memory_space<vmem>>, vector<8x16xf32>,
    %c0_8 = arith.constant 0 : index
    %c0_9 = arith.constant 0 : index
    %9 = vector.load %arg4[%c0_8, %c0_9] : memref<8x16xf32, #tpu.memory_space<vmem>>, vector<8x16xf32>
    %c24 = arith.constant 24 : index
    %c0_10 = arith.constant 0 : index
    %10 = vector.load %arg6[%c24, %c0_10] : memref<32x16xf32, #tpu.memory_space<vmem>>, vector<8x16xf32>
    tpu.vector_store %arg6[%c24, %c0_10], %9 {strides = array<i32>} : memref<32x16xf32, #tpu.memory_space<vmem>>, vector<8x16xf32>,
    %c16_i32 = arith.constant 16 : i32
    %11 = arith.muli %arg1, %c16_i32 : i32
    %c18_i32 = arith.constant 18 : i32
    %12 = arith.subi %c18_i32, %11 : i32
    %c20_i32 = arith.constant 20 : i32
    %13 = arith.cmpi slt, %12, %c20_i32 : i32
    %14 = arith.extui %13 : i1 to i32
    %c0_i32_11 = arith.constant 0 : i32
    %15 = arith.cmpi ne, %14, %c0_i32_11 : i32
    scf.if %15 {
      %c6_i32_27 = arith.constant 6 : i32
      %48 = arith.addi %c6_i32_27, %12 : i32
      %c1_i32_28 = arith.constant 1 : i32
      %49 = arith.subi %48, %c1_i32_28 : i32
      %50 = arith.index_cast %49 : i32 to index
      %c0_29 = arith.constant 0 : index
      %51 = vector.load %arg6[%50, %c0_29] : memref<32x16xf32, #tpu.memory_space<vmem>>, vector<1x16xf32>
      %52 = vector.shape_cast %51 : vector<1x16xf32> to vector<1x16xf32>
      %53 = vector.broadcast %52 : vector<1x16xf32> to vector<2x16xf32>
      %c6_i32_30 = arith.constant 6 : i32
      %54 = arith.addi %c6_i32_30, %12 : i32
      %55 = arith.index_cast %54 : i32 to index
      %c0_31 = arith.constant 0 : index
      %56 = vector.load %arg6[%55, %c0_31] : memref<32x16xf32, #tpu.memory_space<vmem>>, vector<2x16xf32>
      tpu.vector_store %arg6[%55, %c0_31], %53 {strides = array<i32>} : memref<32x16xf32, #tpu.memory_space<vmem>>, vector<2x16xf32>,
    } else {
    }
    %c0_i32_12 = arith.constant 0 : i32
    %c16_i32_13 = arith.constant 16 : i32
    %16 = arith.muli %c0_i32_12, %c16_i32_13 : i32
    %17 = tpu.assume_multiple %16, 16 : i32
    %cst = arith.constant 0.000000e+00 : f32
    %18 = vector.broadcast %cst : f32 to vector<16x16xf32>
    %c6_i32 = arith.constant 6 : i32
    %19 = arith.addi %c6_i32, %17 : i32
    %c0_i32_14 = arith.constant 0 : i32
    %20 = arith.addi %19, %c0_i32_14 : i32
    %21 = arith.index_cast %20 : i32 to index
    %c0_15 = arith.constant 0 : index
    %22 = vector.load %arg6[%21, %c0_15] : memref<32x16xf32, #tpu.memory_space<vmem>>, vector<16x16xf32>
    %23 = arith.addf %18, %22 : vector<16x16xf32>
    %c6_i32_16 = arith.constant 6 : i32
    %24 = arith.addi %c6_i32_16, %17 : i32
    %c1_i32 = arith.constant 1 : i32
    %25 = arith.addi %24, %c1_i32 : i32
    %26 = arith.index_cast %25 : i32 to index
    %c0_17 = arith.constant 0 : index
    %27 = vector.load %arg6[%26, %c0_17] : memref<32x16xf32, #tpu.memory_space<vmem>>, vector<16x16xf32>
    %28 = arith.addf %23, %27 : vector<16x16xf32>
    %c6_i32_18 = arith.constant 6 : i32
    %29 = arith.addi %c6_i32_18, %17 : i32
    %c2_i32 = arith.constant 2 : i32
    %30 = arith.addi %29, %c2_i32 : i32
    %31 = arith.index_cast %30 : i32 to index
    %c0_19 = arith.constant 0 : index
    %32 = vector.load %arg6[%31, %c0_19] : memref<32x16xf32, #tpu.memory_space<vmem>>, vector<16x16xf32>
    %33 = arith.addf %28, %32 : vector<16x16xf32>
    %c6_i32_20 = arith.constant 6 : i32
    %34 = arith.addi %c6_i32_20, %17 : i32
    %c3_i32 = arith.constant 3 : i32
    %35 = arith.addi %34, %c3_i32 : i32
    %36 = arith.index_cast %35 : i32 to index
    %c0_21 = arith.constant 0 : index
    %37 = vector.load %arg6[%36, %c0_21] : memref<32x16xf32, #tpu.memory_space<vmem>>, vector<16x16xf32>
    %38 = arith.addf %33, %37 : vector<16x16xf32>
    %c6_i32_22 = arith.constant 6 : i32
    %39 = arith.addi %c6_i32_22, %17 : i32
    %c4_i32 = arith.constant 4 : i32
    %40 = arith.addi %39, %c4_i32 : i32
    %41 = arith.index_cast %40 : i32 to index
    %c0_23 = arith.constant 0 : index
    %42 = vector.load %arg6[%41, %c0_23] : memref<32x16xf32, #tpu.memory_space<vmem>>, vector<16x16xf32>
    %43 = arith.addf %38, %42 : vector<16x16xf32>
    %cst_24 = arith.constant 2.000000e-01 : f32
    %44 = vector.broadcast %cst_24 : f32 to vector<16x16xf32>
    %45 = arith.mulf %43, %44 : vector<16x16xf32>
    %46 = arith.index_cast %17 : i32 to index
    %c0_25 = arith.constant 0 : index
    %47 = vector.load %arg5[%46, %c0_25] : memref<16x16xf32, #tpu.memory_space<vmem>>, vector<16x16xf32>
    tpu.vector_store %arg5[%46, %c0_25], %45 {strides = array<i32>} : memref<16x16xf32, #tpu.memory_space<vmem>>, vector<16x16xf32>,
    %c1_i32_26 = arith.constant 1 : i32
    return
  }
  func.func @transform_0(%arg0: i32, %arg1: i32) -> (i32, i32) {
    %c2_i32 = arith.constant 2 : i32
    %0 = arith.muli %arg1, %c2_i32 : i32
    %c1_i32 = arith.constant 1 : i32
    %1 = arith.subi %0, %c1_i32 : i32
    %c0_i32 = arith.constant 0 : i32
    %2 = arith.maxsi %1, %c0_i32 : i32
    %c0_i32_0 = arith.constant 0 : i32
    return %2, %arg0 : i32, i32
  }
  func.func @transform_1(%arg0: i32, %arg1: i32) -> (i32, i32) {
    %c0_i32 = arith.constant 0 : i32
    %0 = arith.minsi %arg1, %c0_i32 : i32
    %c0_i32_0 = arith.constant 0 : i32
    return %0, %arg0 : i32, i32
  }
  func.func @transform_2(%arg0: i32, %arg1: i32) -> (i32, i32) {
    %c1_i32 = arith.constant 1 : i32
    %0 = arith.addi %arg1, %c1_i32 : i32
    %c2_i32 = arith.constant 2 : i32
    %1 = arith.muli %0, %c2_i32 : i32
    %c1_i32_0 = arith.constant 1 : i32
    %2 = arith.minsi %1, %c1_i32_0 : i32
    %c0_i32 = arith.constant 0 : i32
    return %2, %arg0 : i32, i32
  }
  func.func @transform_3(%arg0: i32, %arg1: i32) -> (i32, i32) {
    %c0_i32 = arith.constant 0 : i32
    return %arg1, %arg0 : i32, i32
  }
}

</mosaic_0001>

<llo_original>
// kernel: tpu_custom_call.1
$region0: #{tpu_custom_call.1}
  #allocation0 [shape = 'u32[]', space=smem, size = 0x4, offset = 0x4, fixed_abs, tag = 'smem constant byte address 0x4 - core index']
  #allocation1 [shape = 'u32[72,128]{1,0:T(1,128)}', space=vmem, size = 0x9000, scoped, tag = 'internal scratch']
  #allocation2 [shape = 'f32[32,16]{1,0:T(8,128)}', space=vmem, size = 0x4000, scoped, tag = 'scratch operand']
  %s0 = inlined_call_operand.hbm [shape: f32[16,16], index: 0, kind: input, shape index: {}]
  %s1 = inlined_call_operand.hbm [shape: f32[16,16], index: 1, kind: input, shape index: {}]
  %s2 = inlined_call_operand.hbm [shape: f32[16,16], index: 2, kind: input, shape index: {}]
  %s3 = inlined_call_operand.hbm [shape: f32[16,16], index: 3, kind: output, shape index: {}]
  %s4 = sld [smem:[#allocation0]]
  $region38: #{tpu_custom_call.1} parent=0
    _
  %s6 = ssub.s32 1, %s4
  %s7 = scalar_select 0, %s6, %s4
  $region1: #{tpu_custom_call.1} parent=0
    #allocation3 [shape = 'u8[4096]{0}', space=vmem, size = 0x1000, scoped, tag = 'input window, operand 0, single buffered']
    #allocation4 [shape = 's32[1]{0}', space=sflag, size = 0x4, scoped, tag = 'scoped memory for tpu_custom_call.1']
    #allocation5 [shape = 's32[1]{0}', space=sflag, size = 0x4, scoped, tag = 'scoped memory for tpu_custom_call.1']
    #allocation6 [shape = 'u8[8192]{0}', space=vmem, size = 0x2000, scoped, tag = 'input window, operand 1, single buffered']
    #allocation7 [shape = 's32[1]{0}', space=sflag, size = 0x4, scoped, tag = 'scoped memory for tpu_custom_call.1']
    #allocation8 [shape = 'u8[4096]{0}', space=vmem, size = 0x1000, scoped, tag = 'input window, operand 2, single buffered']
    #allocation9 [shape = 'u8[8192]{0}', space=vmem, size = 0x2000, scoped, tag = 'output window, operand 0, single buffered']
    %8 = vsyncpa [#allocation4], 0
    %9 = vsyncpa [#allocation7], 0
    %10 = vsyncpa [#allocation5], 0
    // Predicated region
    $region2: #{tpu_custom_call.1} parent=1 // pred_check
      _
    $region3: #{tpu_custom_call.1} parent=1 // pred_check_branch
      %12 = sbr.rel (0) target = $region5
    $region4: #{tpu_custom_call.1} parent=1 // pred_region
      %s13 = smul.u32 0, 2
      %s14 = ssub.s32 %s13, 1
      %p15 = scmp.gt.s32.totalorder %s14, 0
      %s16 = scalar_select %p15, %s14, 0
      %18 = vsyncadd [#allocation4], 0
      %s19 = smul.addr %s16, 8
      %s20 = scalar_lea.hbm %s0, %s19
      %s22 = sshll.u32 %s20, 4
      %s23 = int_to_ptr.hbm [resolvable:$true] %s22
      %s24 = sshll.u32 [#allocation3], 4
      %s25 = int_to_ptr.vmem [resolvable:$true] %s24
      %27 = dma.hbm_to_vmem [thread:$0]  %s23, 128, %s25, [#allocation4]
    $region5: #{tpu_custom_call.1} parent=1 // pred_fallthru
      _
    // Predicated region
    $region6: #{tpu_custom_call.1} parent=1 // pred_check
      _
    $region7: #{tpu_custom_call.1} parent=1 // pred_check_branch
      %29 = sbr.rel (0) target = $region9
    $region8: #{tpu_custom_call.1} parent=1 // pred_region
      %31 = vsyncadd [#allocation7], 0
      %s32 = sshll.u32 %s1, 4
      %s33 = int_to_ptr.hbm [resolvable:$true] %s32
      %s34 = sshll.u32 [#allocation6], 4
      %s35 = int_to_ptr.vmem [resolvable:$true] %s34
      %40 = dma.hbm_to_vmem [thread:$0]  %s33, 256, %s35, [#allocation7], 128, 128, 8
    $region9: #{tpu_custom_call.1} parent=1 // pred_fallthru
      _
    // Predicated region
    $region10: #{tpu_custom_call.1} parent=1 // pred_check
      _
    $region11: #{tpu_custom_call.1} parent=1 // pred_check_branch
      %42 = sbr.rel (0) target = $region13
    $region12: #{tpu_custom_call.1} parent=1 // pred_region
      %s43 = sadd.s32 0, 1
      %s44 = smul.u32 %s43, 2
      %p45 = scmp.lt.s32.totalorder %s44, 1
      %s46 = scalar_select %p45, %s44, 1
      %48 = vsyncadd [#allocation7], 0
      %s49 = smul.addr %s46, 8
      %s50 = scalar_lea.hbm %s2, %s49
      %s52 = sshll.u32 %s50, 4
      %s53 = int_to_ptr.hbm [resolvable:$true] %s52
      %s54 = sshll.u32 [#allocation8], 4
      %s55 = int_to_ptr.vmem [resolvable:$true] %s54
      %57 = dma.hbm_to_vmem [thread:$0]  %s53, 128, %s55, [#allocation7]
    $region13: #{tpu_custom_call.1} parent=1 // pred_fallthru
      _
    // Predicated region
    $region14: #{tpu_custom_call.1} parent=1 // pred_check
      _
    $region15: #{tpu_custom_call.1} parent=1 // pred_check_branch
      %59 = sbr.rel (0) target = $region17
    $region16: #{tpu_custom_call.1} parent=1 // pred_region
      %61 = dma.done [#allocation4], 128
    $region17: #{tpu_custom_call.1} parent=1 // pred_fallthru
      _
    // Predicated region
    $region18: #{tpu_custom_call.1} parent=1 // pred_check
      _
    $region19: #{tpu_custom_call.1} parent=1 // pred_check_branch
      %63 = sbr.rel (0) target = $region21
    $region20: #{tpu_custom_call.1} parent=1 // pred_region
      %65 = dma.done [#allocation7], 256
    $region21: #{tpu_custom_call.1} parent=1 // pred_fallthru
      _
    // Predicated region
    $region22: #{tpu_custom_call.1} parent=1 // pred_check
      _
    $region23: #{tpu_custom_call.1} parent=1 // pred_check_branch
      %67 = sbr.rel (0) target = $region25
    $region24: #{tpu_custom_call.1} parent=1 // pred_region
      %69 = dma.done [#allocation7], 128
    $region25: #{tpu_custom_call.1} parent=1 // pred_fallthru
      _
    %s70 = smul.u32 0, 2
    %s71 = ssub.s32 %s70, 1
    %p72 = scmp.gt.s32.totalorder %s71, 0
    %s73 = scalar_select %p72, %s71, 0
    %s74 = sadd.s32 0, 1
    %s75 = smul.u32 %s74, 2
    %p76 = scmp.lt.s32.totalorder %s75, 1
    %s77 = scalar_select %p76, %s75, 1
    %v78 = vld [vmem:[#allocation6] sm:$0xff]
    %v79 = vld [vmem:[#allocation6 + $0x8] sm:$0xff]
    %vm80 = vcmask 130048
    %81 = vst.msk [vmem:[#allocation2 + $0x8] sm:$0xff] %vm80, %v78
    %82 = vst.msk [vmem:[#allocation2 + $0x10] sm:$0xff] %vm80, %v79
    %v83 = vld [vmem:[#allocation6] sm:$0x1]
    %v84 = vperm.slane %v83, 0
    %v85 = vld [vmem:[#allocation3] sm:$0xff]
    %p86 = scmp.eq.s32.totalorder 0, 0
    %s87 = scalar_select %p86, 1, 0
    %v88 = vstv %s87
    %vm89 = vcmp.eq.s32.totalorder %v88, 1
    %v90 = vsel %vm89, %v84, %v85
    %91 = vst.msk [vmem:[#allocation2] sm:$0xff] %vm80, %v90
    %v92 = vld [vmem:[#allocation8] sm:$0xff]
    %93 = vst.msk [vmem:[#allocation2 + $0x18] sm:$0xff] %vm80, %v92
    %s94 = smul.u32 0, 16
    %s95 = ssub.s32 18, %s94
    %p96 = scmp.lt.s32.totalorder %s95, 20
    // Predicated region
    $region26: #{tpu_custom_call.1} parent=1 // pred_check
      %p97 = pneg %p96
    $region27: #{tpu_custom_call.1} parent=1 // pred_check_branch
      %99 = sbr.rel (%p97) target = $region29
    $region28: #{tpu_custom_call.1} parent=1 // pred_region
      %s100 = ssub.s32 23, %s94
      %s101 = scalar_lea.vmem [#allocation2], %s100
      %v102 = vld [vmem:[%s101] sm:$0x1]
      %v103 = vperm.slane %v102, 0
      %s104 = ssub.s32 24, %s94
      %s105 = scalar_lea.vmem [#allocation2], %s104
      %vm106 = vcmask 123904
      %107 = vst.msk [vmem:[%s105] sm:$0x3] %vm106, %v103
    $region29: #{tpu_custom_call.1} parent=1 // pred_fallthru
      _
    %s108 = sadd.s32 0, 6
    %s109 = scalar_lea.vmem [#allocation2], %s108
    %v110 = vld [vmem:[%s109] sm:$0xff]
    %v111 = vld [vmem:[%s109 + $0x8] sm:$0xff]
    %v112 = vadd.f32 %v110, 0.0
    %v113 = vadd.f32 %v111, 0.0
    %s114 = sadd.s32 0, 7
    %s115 = scalar_lea.vmem [#allocation2], %s114
    %v116 = vld [vmem:[%s115] sm:$0xff]
    %v117 = vld [vmem:[%s115 + $0x8] sm:$0xff]
    %v118 = vadd.f32 %v112, %v116
    %v119 = vadd.f32 %v113, %v117
    %s120 = sadd.s32 0, 8
    %s121 = scalar_lea.vmem [#allocation2], %s120
    %v122 = vld [vmem:[%s121] sm:$0xff]
    %v123 = vld [vmem:[%s121 + $0x8] sm:$0xff]
    %v124 = vadd.f32 %v118, %v122
    %v125 = vadd.f32 %v119, %v123
    %s126 = sadd.s32 0, 9
    %s127 = scalar_lea.vmem [#allocation2], %s126
    %v128 = vld [vmem:[%s127] sm:$0xff]
    %v129 = vld [vmem:[%s127 + $0x8] sm:$0xff]
    %v130 = vadd.f32 %v124, %v128
    %v131 = vadd.f32 %v125, %v129
    %s132 = sadd.s32 0, 10
    %s133 = scalar_lea.vmem [#allocation2], %s132
    %v134 = vld [vmem:[%s133] sm:$0xff]
    %v135 = vld [vmem:[%s133 + $0x8] sm:$0xff]
    %v136 = vadd.f32 %v130, %v134
    %v137 = vadd.f32 %v131, %v135
    %v138 = vmul.f32 %v136, 0.2
    %v139 = vmul.f32 %v137, 0.2
    %140 = vst.msk [vmem:[#allocation9] sm:$0xff] %vm80, %v138
    %141 = vst.msk [vmem:[#allocation9 + $0x8] sm:$0xff] %vm80, %v139
    // Predicated region
    $region30: #{tpu_custom_call.1} parent=1 // pred_check
      _
    $region31: #{tpu_custom_call.1} parent=1 // pred_check_branch
      %143 = sbr.rel (0) target = $region33
    $region32: #{tpu_custom_call.1} parent=1 // pred_region
      %145 = vsyncadd [#allocation5], 0
      %s146 = sshll.u32 [#allocation9], 4
      %s147 = int_to_ptr.vmem [resolvable:$true] %s146
      %s148 = sshll.u32 %s3, 4
      %s149 = int_to_ptr.hbm [resolvable:$true] %s148
      %154 = dma.vmem_to_hbm [thread:$0]  %s147, 256, %s149, [#allocation5], 128, 128, 8
    $region33: #{tpu_custom_call.1} parent=1 // pred_fallthru
      _
    // Predicated region
    $region34: #{tpu_custom_call.1} parent=1 // pred_check
      _
    $region35: #{tpu_custom_call.1} parent=1 // pred_check_branch
      %156 = sbr.rel (0) target = $region37
    $region36: #{tpu_custom_call.1} parent=1 // pred_region
      %158 = dma.done [#allocation5], 256
    $region37: #{tpu_custom_call.1} parent=1 // pred_fallthru
      _
    %159 = vsyncpa [#allocation4], 1
    %160 = vsyncpa [#allocation7], 1
    %161 = vsyncpa [#allocation5], 1

</llo_original>
